<compile_context>
chip_gen: v7x
topology: tpu7x:2x2x1
jax: 0.10.0
libtpu: 0.0.40
codegen_flags: <defaults>
</compile_context>

<pallas_src>
import math
import functools

import jax
import jax.numpy as jnp
from jax.experimental import pallas as pl
from jax.experimental.pallas import tpu as pltpu


_SMALL_TABLE_MAX_BYTES = 4 * 1024 * 1024   # table fully VMEM-resident below this
_GATHER_VMEM_BUDGET = 32 * 1024 * 1024     # 4 live (token_tile, D) buffers
_GATHER_VMEM_LIMIT = 48 * 1024 * 1024      # scoped-VMEM limit (fits v7x's 64 MiB)
_MAX_PREFETCH_IDS = 32768                  # ids per pallas_call (SMEM guard)
_UNROLL = 8                                # hand-unroll factor (token_tile % 8 == 0)


def _round_up(x, m):
    return ((x + m - 1) // m) * m


# ---------------------------------------------------------------------------
# Path 1: small table, VMEM-resident, direct dynamic-index gather.
# ---------------------------------------------------------------------------
def _embed_small_kernel(ids_ref, emb_ref, out_ref, *, scale, token_tile):
    """VMEM-resident table gather: no DMAs, no semaphores.

    ids_ref : (N_chunk,) int32 token ids in SMEM (scalar-prefetched).
    emb_ref : (V, D) table staged into VMEM once (constant index_map).
    out_ref : (token_tile, D) output tile in VMEM.
    """
    base = pl.multiple_of(pl.program_id(0) * token_tile, token_tile)

    # Hand-unrolled x8 so scalar id loads / address math / row loads+stores of
    # consecutive rows can co-issue.
    @pl.loop(0, token_tile // _UNROLL)
    def _(blk):
        t0 = blk * _UNROLL
        for u in range(_UNROLL):
            t = t0 + u
            row = ids_ref[base + t]
            # Scale in f32 regardless of table dtype (PyTorch scales in f32).
            out_ref[t] = (emb_ref[row].astype(jnp.float32) * scale
                          ).astype(out_ref.dtype)


def _input_embeddings_small(ids_flat, emb_table, scale):
    N = ids_flat.shape[0]
    V, D = emb_table.shape
    itemsize = jnp.dtype(emb_table.dtype).itemsize

    # Tokens per grid step: amortize the ~0.35us per-step overhead, but keep
    # the 2-deep out double buffer small next to the resident table.
    out_budget = 8 * 1024 * 1024
    cap = max(8, (out_budget // (2 * D * itemsize)) // 8 * 8)
    token_tile = min(256, cap, _round_up(N, 8))
    token_tile = max(8, (token_tile // 8) * 8)

    n_tiles = (N + token_tile - 1) // token_tile
    n_pad = n_tiles * token_tile
    ids = ids_flat
    if n_pad != N:
        # Pad with id 0 (a valid row); padded outputs are sliced off below.
        ids = jnp.pad(ids, (0, n_pad - N))

    vmem_limit = int(min(_GATHER_VMEM_LIMIT,
                         2 * V * D * itemsize
                         + 2 * token_tile * D * itemsize
                         + 4 * 1024 * 1024))

    out = pl.pallas_call(
        functools.partial(_embed_small_kernel, scale=scale,
                          token_tile=token_tile),
        out_shape=jax.ShapeDtypeStruct((n_pad, D), emb_table.dtype),
        grid_spec=pltpu.PrefetchScalarGridSpec(
            num_scalar_prefetch=1,                                  # ids -> SMEM
            grid=(n_tiles,),
            in_specs=[pl.BlockSpec((V, D), lambda i, ids: (0, 0))],  # table in VMEM
            out_specs=pl.BlockSpec((token_tile, D), lambda i, ids: (i, 0)),
        ),
        compiler_params=pltpu.CompilerParams(
            # No cross-step state: this axis may be split across cores.
            dimension_semantics=("parallel",),
            vmem_limit_bytes=vmem_limit),
    )(ids, emb_table)
    return out[:N]


# ---------------------------------------------------------------------------
# Path 2: large table, HBM-resident, manual double-buffered row-DMA gather.
# ---------------------------------------------------------------------------
def _embed_gather_kernel(ids_ref, emb_hbm, out_ref, rows_vmem, copy_sems, *,
                         scale, token_tile):
    """HBM row gather with 2-deep manual double buffering.

    ids_ref   : (N_chunk,) int32 token ids in SMEM (scalar-prefetched).
    emb_hbm   : (V, D) embedding table left in HBM (memory_space=pl.ANY).
    out_ref   : (token_tile, D) output tile in VMEM.
    rows_vmem : (2, token_tile, D) double-buffered row-staging scratch.
    copy_sems : (2,) DMA semaphores, one per slot (shared by all row copies).
    """
    step = pl.program_id(0)
    n_steps = pl.num_programs(0)
    slot = step % 2

    def issue_fetch(tile_idx, slot_idx):
        base = pl.multiple_of(tile_idx * token_tile, token_tile)

        # Hand-unrolled x8: the binding resource here is the scalar/misc slots
        # building token_tile tiny descriptors; unrolling lets SMEM id loads,
        # address math and descriptor pushes overlap across iterations.
        @pl.loop(0, token_tile // _UNROLL)
        def _(blk):
            t0 = blk * _UNROLL
            for u in range(_UNROLL):
                t = t0 + u
                row = ids_ref[base + t]
                pltpu.make_async_copy(
                    emb_hbm.at[row], rows_vmem.at[slot_idx, t],
                    copy_sems.at[slot_idx]).start()

    # Prime the pipeline on the first grid step.
    @pl.when(step == 0)
    def _():
        issue_fetch(0, 0)

    # Prefetch the next tile's rows into the other slot while this tile drains.
    @pl.when(step + 1 < n_steps)
    def _():
        issue_fetch(step + 1, 1 - slot)

    # ONE aggregate wait per tile: every row copy into this slot signals the
    # same DMA semaphore, and DMA semaphores count bytes, so one wait sized to
    # the whole (token_tile, D) slot drains exactly what the token_tile row
    # copies signal.  (The descriptor below exists only to carry that size; it
    # is never started.)
    pltpu.make_async_copy(
        rows_vmem.at[slot], rows_vmem.at[slot], copy_sems.at[slot]).wait()

    # Scale in f32 regardless of table dtype (PyTorch parity), then cast back.
    out_ref[...] = (rows_vmem[slot].astype(jnp.float32) * scale
                    ).astype(out_ref.dtype)


def _input_embeddings_gather(ids_flat, emb_table, scale):
    N = ids_flat.shape[0]
    V, D = emb_table.shape
    itemsize = jnp.dtype(emb_table.dtype).itemsize

    # 4 live (token_tile, D) buffers: 2-slot rows_vmem + Pallas' 2-deep out
    # double buffer.  Keep them inside a 32 MiB budget so the kernel fits
    # v7x's 64 MiB VMEM (and v5e/v6e) with headroom.
    cap = max(8, (_GATHER_VMEM_BUDGET // (4 * D * itemsize)) // 8 * 8)
    token_tile = min(512, cap, _round_up(N, 8))
    token_tile = max(8, (token_tile // 8) * 8)

    n_tiles = (N + token_tile - 1) // token_tile
    n_pad = n_tiles * token_tile
    ids = ids_flat
    if n_pad != N:
        # Pad with id 0 (a valid row); padded outputs are sliced off below.
        # TODO(synk): the tail tile still fetches/writes up to token_tile-1
        # padded rows; skipping them needs a dynamic issue/wait count.
        ids = jnp.pad(ids, (0, n_pad - N))

    vmem_limit = int(min(_GATHER_VMEM_LIMIT,
                         4 * token_tile * D * itemsize + 8 * 1024 * 1024))

    kernel = functools.partial(_embed_gather_kernel, scale=scale,
                               token_tile=token_tile)

    out = pl.pallas_call(
        kernel,
        out_shape=jax.ShapeDtypeStruct((n_pad, D), emb_table.dtype),
        grid_spec=pltpu.PrefetchScalarGridSpec(
            num_scalar_prefetch=1,                         # ids -> SMEM
            grid=(n_tiles,),
            in_specs=[pl.BlockSpec(memory_space=pl.ANY)],  # table stays in HBM
            out_specs=pl.BlockSpec((token_tile, D), lambda i, ids: (i, 0)),
            scratch_shapes=[
                pltpu.VMEM((2, token_tile, D), emb_table.dtype),
                pltpu.SemaphoreType.DMA((2,)),
            ],
        ),
        compiler_params=pltpu.CompilerParams(
            # Cross-step double-buffer state lives in scratch, so this axis
            # must stay sequential on one core.
            # TODO(synk): v7x megacore split (grid=(2, n_tiles//2) with a
            # core-parallel outer axis and per-core priming) would ~2x the
            # descriptor issue rate; left out to keep the pipeline state simple.
            dimension_semantics=("arbitrary",),
            vmem_limit_bytes=vmem_limit),
    )(ids, emb_table)
    return out[:N]


# ---------------------------------------------------------------------------
# Public wrapper: out = embedding[x] * sqrt(d_model)
# ---------------------------------------------------------------------------
def input_embeddings(x_ids, emb_table):
    """x_ids: (B, S) int token ids; emb_table: (V, D) -> (B, S, D)."""
    B, S = x_ids.shape
    V, D = emb_table.shape
    N = B * S
    scale = float(math.sqrt(D))
    itemsize = jnp.dtype(emb_table.dtype).itemsize

    ids_flat = x_ids.reshape(N).astype(jnp.int32)

    small = (V * D * itemsize) <= _SMALL_TABLE_MAX_BYTES
    path = _input_embeddings_small if small else _input_embeddings_gather
    # TODO(synk): tables too large for VMEM whose rows are <512 B stay on the
    # per-row-DMA path and are descriptor/latency bound; packing several rows
    # per DMA would be needed to approach HBM peak for that corner.

    if N <= _MAX_PREFETCH_IDS:
        out_flat = path(ids_flat, emb_table, scale)
    else:
        # SMEM guard: keep each pallas_call's prefetched id vector small.
        outs = []
        for start in range(0, N, _MAX_PREFETCH_IDS):
            outs.append(path(ids_flat[start:start + _MAX_PREFETCH_IDS],
                             emb_table, scale))
        out_flat = jnp.concatenate(outs, axis=0)

    return out_flat.reshape(B, S, D)


if __name__ == "__main__":
    # Small, deterministic setup consistent with the module's forward:
    # batch=2, seq=8, d_model=32, vocab_size=64.
    B, S = 2, 8
    d_model, vocab_size = 32, 64

    key = jax.random.PRNGKey(0)
    k_emb, k_ids = jax.random.split(key)

    # nn.Embedding default init: weight ~ N(0, 1)
    emb_table = jax.random.normal(k_emb, (vocab_size, d_model), dtype=jnp.float32)
    x = jax.random.randint(k_ids, (B, S), 0, vocab_size, dtype=jnp.int32)

    out = input_embeddings(x, emb_table)
    out = jax.block_until_ready(out)

    # Pure-JAX reference check (embedding lookup * sqrt(d_model))
    ref = emb_table[x] * math.sqrt(d_model)
    assert out.shape == (B, S, d_model)
    assert jnp.allclose(out, ref, atol=1e-5, rtol=1e-5)

    print("KERNEL_OK")
</pallas_src>

<mosaic_0001>
module attributes {stable_mosaic.version = 11 : i64} {
  func.func @_embed_small_kernel(%arg0: i32, %arg1: memref<16xi32, #tpu.memory_space<smem>>, %arg2: memref<64x32xf32, #tpu.memory_space<vmem>>, %arg3: memref<16x32xf32, #tpu.memory_space<vmem>>) attributes {dimension_semantics = [#tpu.dimension_semantics<parallel>], iteration_bounds = array<i64: 1>, scalar_prefetch = 1 : i64, scratch_operands = 0 : i64, tpu.core_type = #tpu.core_type<tc>, window_params = [{pipeline_mode = #tpu.pipeline_mode<synchronous>, transform_indices = @transform_0, window_bounds = array<i64: 64, 32>}, {transform_indices = @transform_1, window_bounds = array<i64: 16, 32>}]} {
    %c16_i32 = arith.constant 16 : i32
    %0 = arith.muli %arg0, %c16_i32 : i32
    %1 = tpu.assume_multiple %0, 16 : i32
    %c0_i32 = arith.constant 0 : i32
    %c2_i32 = arith.constant 2 : i32
    %2 = arith.addi %c0_i32, %c2_i32 : i32
    %c1_i32 = arith.constant 1 : i32
    scf.for %arg4 = %c0_i32 to %2 step %c1_i32  : i32 {
      %c1_i32_1 = arith.constant 1 : i32
      %3 = arith.muli %arg4, %c1_i32_1 : i32
      %c0_i32_2 = arith.constant 0 : i32
      %4 = arith.addi %c0_i32_2, %3 : i32
      %c8_i32 = arith.constant 8 : i32
      %5 = arith.muli %4, %c8_i32 : i32
      %c0_i32_3 = arith.constant 0 : i32
      %6 = arith.addi %5, %c0_i32_3 : i32
      %7 = arith.addi %1, %6 : i32
      %8 = arith.index_cast %7 : i32 to index
      %9 = memref.load %arg1[%8] : memref<16xi32, #tpu.memory_space<smem>>
      %10 = arith.index_cast %9 : i32 to index
      %c0 = arith.constant 0 : index
      %11 = vector.load %arg2[%10, %c0] : memref<64x32xf32, #tpu.memory_space<vmem>>, vector<1x32xf32>
      %12 = vector.shape_cast %11 : vector<1x32xf32> to vector<32xf32>
      %cst = arith.constant 5.65685415 : f32
      %13 = vector.broadcast %cst : f32 to vector<32xf32>
      %14 = arith.mulf %12, %13 : vector<32xf32>
      %15 = arith.index_cast %6 : i32 to index
      %c0_4 = arith.constant 0 : index
      %16 = vector.load %arg3[%15, %c0_4] : memref<16x32xf32, #tpu.memory_space<vmem>>, vector<1x32xf32>
      %17 = vector.shape_cast %16 : vector<1x32xf32> to vector<32xf32>
      %18 = vector.shape_cast %14 : vector<32xf32> to vector<1x32xf32>
      tpu.vector_store %arg3[%15, %c0_4], %18 {strides = array<i32>} : memref<16x32xf32, #tpu.memory_space<vmem>>, vector<1x32xf32>,
      %c1_i32_5 = arith.constant 1 : i32
      %19 = arith.addi %5, %c1_i32_5 : i32
      %20 = arith.addi %1, %19 : i32
      %21 = arith.index_cast %20 : i32 to index
      %22 = memref.load %arg1[%21] : memref<16xi32, #tpu.memory_space<smem>>
      %23 = arith.index_cast %22 : i32 to index
      %c0_6 = arith.constant 0 : index
      %24 = vector.load %arg2[%23, %c0_6] : memref<64x32xf32, #tpu.memory_space<vmem>>, vector<1x32xf32>
      %25 = vector.shape_cast %24 : vector<1x32xf32> to vector<32xf32>
      %cst_7 = arith.constant 5.65685415 : f32
      %26 = vector.broadcast %cst_7 : f32 to vector<32xf32>
      %27 = arith.mulf %25, %26 : vector<32xf32>
      %28 = arith.index_cast %19 : i32 to index
      %c0_8 = arith.constant 0 : index
      %29 = vector.load %arg3[%28, %c0_8] : memref<16x32xf32, #tpu.memory_space<vmem>>, vector<1x32xf32>
      %30 = vector.shape_cast %29 : vector<1x32xf32> to vector<32xf32>
      %31 = vector.shape_cast %27 : vector<32xf32> to vector<1x32xf32>
      tpu.vector_store %arg3[%28, %c0_8], %31 {strides = array<i32>} : memref<16x32xf32, #tpu.memory_space<vmem>>, vector<1x32xf32>,
      %c2_i32_9 = arith.constant 2 : i32
      %32 = arith.addi %5, %c2_i32_9 : i32
      %33 = arith.addi %1, %32 : i32
      %34 = arith.index_cast %33 : i32 to index
      %35 = memref.load %arg1[%34] : memref<16xi32, #tpu.memory_space<smem>>
      %36 = arith.index_cast %35 : i32 to index
      %c0_10 = arith.constant 0 : index
      %37 = vector.load %arg2[%36, %c0_10] : memref<64x32xf32, #tpu.memory_space<vmem>>, vector<1x32xf32>
      %38 = vector.shape_cast %37 : vector<1x32xf32> to vector<32xf32>
      %cst_11 = arith.constant 5.65685415 : f32
      %39 = vector.broadcast %cst_11 : f32 to vector<32xf32>
      %40 = arith.mulf %38, %39 : vector<32xf32>
      %41 = arith.index_cast %32 : i32 to index
      %c0_12 = arith.constant 0 : index
      %42 = vector.load %arg3[%41, %c0_12] : memref<16x32xf32, #tpu.memory_space<vmem>>, vector<1x32xf32>
      %43 = vector.shape_cast %42 : vector<1x32xf32> to vector<32xf32>
      %44 = vector.shape_cast %40 : vector<32xf32> to vector<1x32xf32>
      tpu.vector_store %arg3[%41, %c0_12], %44 {strides = array<i32>} : memref<16x32xf32, #tpu.memory_space<vmem>>, vector<1x32xf32>,
      %c3_i32 = arith.constant 3 : i32
      %45 = arith.addi %5, %c3_i32 : i32
      %46 = arith.addi %1, %45 : i32
      %47 = arith.index_cast %46 : i32 to index
      %48 = memref.load %arg1[%47] : memref<16xi32, #tpu.memory_space<smem>>
      %49 = arith.index_cast %48 : i32 to index
      %c0_13 = arith.constant 0 : index
      %50 = vector.load %arg2[%49, %c0_13] : memref<64x32xf32, #tpu.memory_space<vmem>>, vector<1x32xf32>
      %51 = vector.shape_cast %50 : vector<1x32xf32> to vector<32xf32>
      %cst_14 = arith.constant 5.65685415 : f32
      %52 = vector.broadcast %cst_14 : f32 to vector<32xf32>
      %53 = arith.mulf %51, %52 : vector<32xf32>
      %54 = arith.index_cast %45 : i32 to index
      %c0_15 = arith.constant 0 : index
      %55 = vector.load %arg3[%54, %c0_15] : memref<16x32xf32, #tpu.memory_space<vmem>>, vector<1x32xf32>
      %56 = vector.shape_cast %55 : vector<1x32xf32> to vector<32xf32>
      %57 = vector.shape_cast %53 : vector<32xf32> to vector<1x32xf32>
      tpu.vector_store %arg3[%54, %c0_15], %57 {strides = array<i32>} : memref<16x32xf32, #tpu.memory_space<vmem>>, vector<1x32xf32>,
      %c4_i32 = arith.constant 4 : i32
      %58 = arith.addi %5, %c4_i32 : i32
      %59 = arith.addi %1, %58 : i32
      %60 = arith.index_cast %59 : i32 to index
      %61 = memref.load %arg1[%60] : memref<16xi32, #tpu.memory_space<smem>>
      %62 = arith.index_cast %61 : i32 to index
      %c0_16 = arith.constant 0 : index
      %63 = vector.load %arg2[%62, %c0_16] : memref<64x32xf32, #tpu.memory_space<vmem>>, vector<1x32xf32>
      %64 = vector.shape_cast %63 : vector<1x32xf32> to vector<32xf32>
      %cst_17 = arith.constant 5.65685415 : f32
      %65 = vector.broadcast %cst_17 : f32 to vector<32xf32>
      %66 = arith.mulf %64, %65 : vector<32xf32>
      %67 = arith.index_cast %58 : i32 to index
      %c0_18 = arith.constant 0 : index
      %68 = vector.load %arg3[%67, %c0_18] : memref<16x32xf32, #tpu.memory_space<vmem>>, vector<1x32xf32>
      %69 = vector.shape_cast %68 : vector<1x32xf32> to vector<32xf32>
      %70 = vector.shape_cast %66 : vector<32xf32> to vector<1x32xf32>
      tpu.vector_store %arg3[%67, %c0_18], %70 {strides = array<i32>} : memref<16x32xf32, #tpu.memory_space<vmem>>, vector<1x32xf32>,
      %c5_i32 = arith.constant 5 : i32
      %71 = arith.addi %5, %c5_i32 : i32
      %72 = arith.addi %1, %71 : i32
      %73 = arith.index_cast %72 : i32 to index
      %74 = memref.load %arg1[%73] : memref<16xi32, #tpu.memory_space<smem>>
      %75 = arith.index_cast %74 : i32 to index
      %c0_19 = arith.constant 0 : index
      %76 = vector.load %arg2[%75, %c0_19] : memref<64x32xf32, #tpu.memory_space<vmem>>, vector<1x32xf32>
      %77 = vector.shape_cast %76 : vector<1x32xf32> to vector<32xf32>
      %cst_20 = arith.constant 5.65685415 : f32
      %78 = vector.broadcast %cst_20 : f32 to vector<32xf32>
      %79 = arith.mulf %77, %78 : vector<32xf32>
      %80 = arith.index_cast %71 : i32 to index
      %c0_21 = arith.constant 0 : index
      %81 = vector.load %arg3[%80, %c0_21] : memref<16x32xf32, #tpu.memory_space<vmem>>, vector<1x32xf32>
      %82 = vector.shape_cast %81 : vector<1x32xf32> to vector<32xf32>
      %83 = vector.shape_cast %79 : vector<32xf32> to vector<1x32xf32>
      tpu.vector_store %arg3[%80, %c0_21], %83 {strides = array<i32>} : memref<16x32xf32, #tpu.memory_space<vmem>>, vector<1x32xf32>,
      %c6_i32 = arith.constant 6 : i32
      %84 = arith.addi %5, %c6_i32 : i32
      %85 = arith.addi %1, %84 : i32
      %86 = arith.index_cast %85 : i32 to index
      %87 = memref.load %arg1[%86] : memref<16xi32, #tpu.memory_space<smem>>
      %88 = arith.index_cast %87 : i32 to index
      %c0_22 = arith.constant 0 : index
      %89 = vector.load %arg2[%88, %c0_22] : memref<64x32xf32, #tpu.memory_space<vmem>>, vector<1x32xf32>
      %90 = vector.shape_cast %89 : vector<1x32xf32> to vector<32xf32>
      %cst_23 = arith.constant 5.65685415 : f32
      %91 = vector.broadcast %cst_23 : f32 to vector<32xf32>
      %92 = arith.mulf %90, %91 : vector<32xf32>
      %93 = arith.index_cast %84 : i32 to index
      %c0_24 = arith.constant 0 : index
      %94 = vector.load %arg3[%93, %c0_24] : memref<16x32xf32, #tpu.memory_space<vmem>>, vector<1x32xf32>
      %95 = vector.shape_cast %94 : vector<1x32xf32> to vector<32xf32>
      %96 = vector.shape_cast %92 : vector<32xf32> to vector<1x32xf32>
      tpu.vector_store %arg3[%93, %c0_24], %96 {strides = array<i32>} : memref<16x32xf32, #tpu.memory_space<vmem>>, vector<1x32xf32>,
      %c7_i32 = arith.constant 7 : i32
      %97 = arith.addi %5, %c7_i32 : i32
      %98 = arith.addi %1, %97 : i32
      %99 = arith.index_cast %98 : i32 to index
      %100 = memref.load %arg1[%99] : memref<16xi32, #tpu.memory_space<smem>>
      %101 = arith.index_cast %100 : i32 to index
      %c0_25 = arith.constant 0 : index
      %102 = vector.load %arg2[%101, %c0_25] : memref<64x32xf32, #tpu.memory_space<vmem>>, vector<1x32xf32>
      %103 = vector.shape_cast %102 : vector<1x32xf32> to vector<32xf32>
      %cst_26 = arith.constant 5.65685415 : f32
      %104 = vector.broadcast %cst_26 : f32 to vector<32xf32>
      %105 = arith.mulf %103, %104 : vector<32xf32>
      %106 = arith.index_cast %97 : i32 to index
      %c0_27 = arith.constant 0 : index
      %107 = vector.load %arg3[%106, %c0_27] : memref<16x32xf32, #tpu.memory_space<vmem>>, vector<1x32xf32>
      %108 = vector.shape_cast %107 : vector<1x32xf32> to vector<32xf32>
      %109 = vector.shape_cast %105 : vector<32xf32> to vector<1x32xf32>
      tpu.vector_store %arg3[%106, %c0_27], %109 {strides = array<i32>} : memref<16x32xf32, #tpu.memory_space<vmem>>, vector<1x32xf32>,
    }
    %c2_i32_0 = arith.constant 2 : i32
    return
  }
  func.func @transform_0(%arg0: i32, %arg1: memref<16xi32, #tpu.memory_space<smem>>) -> (i32, i32) {
    %c0_i32 = arith.constant 0 : i32
    %c0_i32_0 = arith.constant 0 : i32
    %c0_i32_1 = arith.constant 0 : i32
    return %c0_i32, %c0_i32_0 : i32, i32
  }
  func.func @transform_1(%arg0: i32, %arg1: memref<16xi32, #tpu.memory_space<smem>>) -> (i32, i32) {
    %c0_i32 = arith.constant 0 : i32
    %c0_i32_0 = arith.constant 0 : i32
    return %arg0, %c0_i32 : i32, i32
  }
}

</mosaic_0001>

<llo_original>
// kernel: tpu_custom_call.1
$region0: #{tpu_custom_call.1}
  #allocation0 [shape = 'u32[]', space=smem, size = 0x4, offset = 0x4, fixed_abs, tag = 'smem constant byte address 0x4 - core index']
  #allocation1 [shape = 'u32[144,128]{1,0:T(1,128)}', space=vmem, size = 0x12000, scoped, tag = 'internal scratch']
  #allocation2 [shape = 's32[1]{0}', space=sflag, size = 0x4, scoped, tag = 'scoped memory for tpu_custom_call.1']
  #allocation3 [shape = 'u8[512]{0}', space=smem, size = 0x200, scoped, tag = 'prefetched SMEM operand 0']
  %s0 = inlined_call_operand.vmem [shape: s32[16], index: 0, kind: input, shape index: {}]
  %s1 = inlined_call_operand.vmem [shape: f32[64,32], index: 1, kind: input, shape index: {}]
  %s2 = inlined_call_operand.hbm [shape: f32[16,32], index: 2, kind: output, shape index: {}]
  %s3 = sld [smem:[#allocation0]]
  $region21: #{tpu_custom_call.1} parent=0
    _
  %s5 = ssub.s32 1, %s3
  %s6 = scalar_select 0, %s5, %s3
  %s7 = sshll.u32 %s0, 4
  %s8 = int_to_ptr.vmem [resolvable:$true] %s7
  %10 = dma.vmem_to_smem %s8, 16, [#allocation3], [#allocation2]
  %11 = dma.done [#allocation2], 16
  %12 = sfence
  $region1: #{tpu_custom_call.1} parent=0
    #allocation4 [shape = 'u8[8192]{0}', space=vmem, size = 0x2000, scoped, tag = 'output window, operand 0, single buffered']
    #allocation5 [shape = 's32[1]{0}', space=sflag, size = 0x4, scoped, tag = 'scoped memory for tpu_custom_call.1']
    %13 = vsyncpa [#allocation5], 0
    // Predicated region
    $region2: #{tpu_custom_call.1} parent=1 // pred_check
      _
    $region3: #{tpu_custom_call.1} parent=1 // pred_check_branch
      %15 = sbr.rel (0) target = $region5
    $region4: #{tpu_custom_call.1} parent=1 // pred_region
      _
    $region5: #{tpu_custom_call.1} parent=1 // pred_fallthru
      _
    %s16 = smul.u32 0, 16
    loop: start=0, step=1, limit=2
    $region6: #{tpu_custom_call.1} parent=1 // loop_pre_header
      _
    $region7: #{tpu_custom_call.1} parent=1 // loop_header
      %s18 = sphi 0, %s22
      %p19 = scmp.ge.s32.totalorder %s18, 2
    $region8: #{tpu_custom_call.1} parent=1 // loop_header_branch
      %21 = sbr.rel (%p19) target = $region12
    $region9: #{tpu_custom_call.1} parent=1 // loop_body
      %s23 = smul.u32 %s18, 8
      %s24 = sadd.s32 %s16, %s23
      %s25 = sld [smem:[#allocation3 + %s24]]
      %s26 = scalar_lea.vmem %s1, %s25
      %v27 = vld [vmem:[%s26] sm:$0x1]
      %v28 = vmul.f32 %v27, 5.656854
      %s29 = scalar_lea.vmem [#allocation4], %s23
      %vm30 = vcmask 253952
      %31 = vst.msk [vmem:[%s29] sm:$0x1] %vm30, %v28
      %s32 = sadd.s32 %s23, 1
      %s33 = sadd.s32 %s16, %s32
      %s34 = sld [smem:[#allocation3 + %s33]]
      %s35 = scalar_lea.vmem %s1, %s34
      %v36 = vld [vmem:[%s35] sm:$0x1]
      %v37 = vmul.f32 %v36, 5.656854
      %s38 = scalar_lea.vmem [#allocation4], %s32
      %39 = vst.msk [vmem:[%s38] sm:$0x1] %vm30, %v37
      %s40 = sadd.s32 %s23, 2
      %s41 = sadd.s32 %s16, %s40
      %s42 = sld [smem:[#allocation3 + %s41]]
      %s43 = scalar_lea.vmem %s1, %s42
      %v44 = vld [vmem:[%s43] sm:$0x1]
      %v45 = vmul.f32 %v44, 5.656854
      %s46 = scalar_lea.vmem [#allocation4], %s40
      %47 = vst.msk [vmem:[%s46] sm:$0x1] %vm30, %v45
      %s48 = sadd.s32 %s23, 3
      %s49 = sadd.s32 %s16, %s48
      %s50 = sld [smem:[#allocation3 + %s49]]
      %s51 = scalar_lea.vmem %s1, %s50
      %v52 = vld [vmem:[%s51] sm:$0x1]
      %v53 = vmul.f32 %v52, 5.656854
      %s54 = scalar_lea.vmem [#allocation4], %s48
      %55 = vst.msk [vmem:[%s54] sm:$0x1] %vm30, %v53
      %s56 = sadd.s32 %s23, 4
      %s57 = sadd.s32 %s16, %s56
      %s58 = sld [smem:[#allocation3 + %s57]]
      %s59 = scalar_lea.vmem %s1, %s58
      %v60 = vld [vmem:[%s59] sm:$0x1]
      %v61 = vmul.f32 %v60, 5.656854
      %s62 = scalar_lea.vmem [#allocation4], %s56
      %63 = vst.msk [vmem:[%s62] sm:$0x1] %vm30, %v61
      %s64 = sadd.s32 %s23, 5
      %s65 = sadd.s32 %s16, %s64
      %s66 = sld [smem:[#allocation3 + %s65]]
      %s67 = scalar_lea.vmem %s1, %s66
      %v68 = vld [vmem:[%s67] sm:$0x1]
      %v69 = vmul.f32 %v68, 5.656854
      %s70 = scalar_lea.vmem [#allocation4], %s64
      %71 = vst.msk [vmem:[%s70] sm:$0x1] %vm30, %v69
      %s72 = sadd.s32 %s23, 6
      %s73 = sadd.s32 %s16, %s72
      %s74 = sld [smem:[#allocation3 + %s73]]
      %s75 = scalar_lea.vmem %s1, %s74
      %v76 = vld [vmem:[%s75] sm:$0x1]
      %v77 = vmul.f32 %v76, 5.656854
      %s78 = scalar_lea.vmem [#allocation4], %s72
      %79 = vst.msk [vmem:[%s78] sm:$0x1] %vm30, %v77
      %s80 = sadd.s32 %s23, 7
      %s81 = sadd.s32 %s16, %s80
      %s82 = sld [smem:[#allocation3 + %s81]]
      %s83 = scalar_lea.vmem %s1, %s82
      %v84 = vld [vmem:[%s83] sm:$0x1]
      %v85 = vmul.f32 %v84, 5.656854
      %s86 = scalar_lea.vmem [#allocation4], %s80
      %87 = vst.msk [vmem:[%s86] sm:$0x1] %vm30, %v85
    $region10: #{tpu_custom_call.1} parent=1 // loop_footer
      %s22 = sadd.s32 1, %s18
    $region11: #{tpu_custom_call.1} parent=1 // loop_footer_branch
      %17 = sbr.rel target = $region7
    $region12: #{tpu_custom_call.1} parent=1 // loop_exit
      _
    // Predicated region
    $region13: #{tpu_custom_call.1} parent=1 // pred_check
      _
    $region14: #{tpu_custom_call.1} parent=1 // pred_check_branch
      %89 = sbr.rel (0) target = $region16
    $region15: #{tpu_custom_call.1} parent=1 // pred_region
      %s91 = ssub.s32 256, 256
      %92 = vsyncadd [#allocation5], %s91
      %s93 = sshll.u32 [#allocation4], 4
      %s94 = int_to_ptr.vmem [resolvable:$true] %s93
      %99 = dma.vmem_to_hbm [thread:$0]  %s94, 256, %s2, [#allocation5], 128, 128, 8
    $region16: #{tpu_custom_call.1} parent=1 // pred_fallthru
      _
    // Predicated region
    $region17: #{tpu_custom_call.1} parent=1 // pred_check
      _
    $region18: #{tpu_custom_call.1} parent=1 // pred_check_branch
      %101 = sbr.rel (0) target = $region20
    $region19: #{tpu_custom_call.1} parent=1 // pred_region
      %102 = dma.done [#allocation5], 256
    $region20: #{tpu_custom_call.1} parent=1 // pred_fallthru
      _
    %103 = vsyncpa [#allocation5], 1

</llo_original>
